<compile_context>
chip_gen: v7x
topology: tpu7x:2x2x1
jax: 0.10.0
libtpu: 0.0.40
codegen_flags: <defaults>
</compile_context>

<pallas_src>
import math
from functools import partial

import numpy as np
import jax
import jax.numpy as jnp
from jax.experimental import pallas as pl
from jax.experimental.pallas import tpu as pltpu


def _spm_act_kernel(pred, heat_ref, disp_ref, heat_o, disp_o):
    """Single grid step.  heat_ref: (1, HW), disp_ref: (2K, HW), lane axis = HW.

    pred=True : heat = sigmoid(logits), disp = tanh(logits)
    pred=False: identity pass-through (targets are already in final form).
    """
    h = heat_ref[...]
    d = disp_ref[...]
    if pred:
        # exp on the EUP, reciprocal kept exact (approx=False) so conf-threshold
        # comparisons match the reference bit-for-bit; this runs once over a
        # single (1, HW) row, so its cost is immaterial either way.
        heat_o[...] = pl.reciprocal(1.0 + jnp.exp(-h), approx=False)
        disp_o[...] = jnp.tanh(d)
    else:
        heat_o[...] = h
        disp_o[...] = d


@partial(jax.jit, static_argnames=("pred",))
def spm_activations(x, pred=True):
    """x: (1, 1+2K, H, W) float32 -> (heat (1, H*W), disp (2K, H*W))."""
    _, C, H, W = x.shape
    K = (C - 1) // 2
    HW = H * W

    # Lane-dense layout: last dim = H*W maps to the 128-wide lane axis.
    heat_in = x[0, 0:1].reshape(1, HW)
    disp_in = x[0, 1:].reshape(2 * K, HW)

    kernel = partial(_spm_act_kernel, bool(pred))
    heat, disp = pl.pallas_call(
        kernel,
        out_shape=(
            jax.ShapeDtypeStruct((1, HW), jnp.float32),
            jax.ShapeDtypeStruct((2 * K, HW), jnp.float32),
        ),
        grid=(1,),  # whole problem (a few tens of KiB) resident in one step
        in_specs=[
            pl.BlockSpec((1, HW), lambda i: (0, 0)),
            pl.BlockSpec((2 * K, HW), lambda i: (0, 0)),
        ],
        out_specs=(
            pl.BlockSpec((1, HW), lambda i: (0, 0)),
            pl.BlockSpec((2 * K, HW), lambda i: (0, 0)),
        ),
        compiler_params=pltpu.CompilerParams(
            dimension_semantics=("arbitrary",)),
    )(heat_in, disp_in)
    return heat, disp


def _nms_spm_np(heat, conf_threshold, dist_threshold):
    """Greedy NMS on the (H, W) heatmap. Dynamic output length -> host side."""
    # TODO(synk): greedy variable-length NMS has no static-shape Pallas equivalent.
    yy, xx = np.where(heat > conf_threshold)
    conf = heat[yy, xx]
    order = np.argsort(-conf, kind="stable")
    conf, yy, xx = conf[order], yy[order], xx[order]
    if conf.shape[0] == 0:
        return np.zeros((0, 3), dtype=np.float32)
    roots = []
    while True:
        cx, cy, cc = xx[0], yy[0], conf[0]
        roots.append((float(cx), float(cy), float(cc)))
        d = np.sqrt((xx - cx) ** 2 + (yy - cy) ** 2)
        keep = d > dist_threshold          # strictly greater, as in the reference
        if not np.any(keep):
            break
        xx, yy, conf = xx[keep], yy[keep], conf[keep]
    return np.array(roots, dtype=np.float32)


class DecodeSPM:
    """JAX/Pallas port of the PyTorch DecodeSPM module."""

    def __init__(self, input_size, sigma, conf_threshold, pred=True):
        self.input_size = input_size
        self.dist_threshold = (6 * sigma + 2) / 2
        self.conf_threshold = conf_threshold
        self.pred = pred

    def __call__(self, x):
        assert x.shape[0] == 1
        _, C, H, W = x.shape
        K = (C - 1) // 2
        output_size = W
        scale = float(self.input_size) / float(output_size)

        x = jnp.asarray(x, jnp.float32)
        heat_d, disp_d = spm_activations(x, pred=self.pred)
        jax.block_until_ready((heat_d, disp_d))

        # Only the tiny heat map crosses to the host for NMS.
        heat = np.asarray(heat_d).reshape(H, W)
        roots = _nms_spm_np(heat, self.conf_threshold, self.dist_threshold)  # grid coords
        if roots.shape[0] == 0:
            return roots, np.zeros((0, K, 3), dtype=np.float32)

        xs = roots[:, 0].astype(np.int64)
        ys = roots[:, 1].astype(np.int64)
        conf = roots[:, 2]

        # Gather the (already tanh'd) displacements at the R root pixels on device;
        # only (2K, R) floats are transferred instead of dense (K, H, W) maps.
        # TODO(synk): R is dynamic, so this gather is eager jnp rather than a
        # static-shape Pallas kernel.
        flat_idx = jnp.asarray((ys * W + xs).astype(np.int32))
        cols = np.asarray(jax.block_until_ready(
            jnp.take(disp_d, flat_idx, axis=1)))              # (2K, R)

        # Per-root decode (R*K scalars) — matches get_spm_keypoints exactly.
        z = math.sqrt(output_size ** 2 + output_size ** 2)
        dx, dy = cols[0::2], cols[1::2]                       # (K, R) each
        kx = dx * z + xs[None, :]
        ky = dy * z + ys[None, :]
        d = np.sqrt((xs[None, :] - kx) ** 2 + (ys[None, :] - ky) ** 2)
        keep = d >= self.dist_threshold                       # zero joint when d < threshold
        kxk = np.where(keep, kx, 0.0)
        kyk = np.where(keep, ky, 0.0)
        kck = np.where(keep, np.broadcast_to(conf[None, :], keep.shape), 0.0)
        keypoints = np.stack([kxk, kyk, kck], axis=-1)        # (K, R, 3)
        keypoints = np.transpose(keypoints, (1, 0, 2)).astype(np.float32)  # (R, K, 3)

        roots_scaled = roots.copy()
        roots_scaled[:, :2] *= scale
        keypoints[..., :2] *= scale
        return roots_scaled, keypoints


if __name__ == "__main__":
    key = jax.random.PRNGKey(0)
    K = 7            # num_keypoints
    H = W = 16       # output_size
    # scale logits so a few heatmap pixels clear the confidence threshold
    x = jax.random.normal(key, (1, 1 + 2 * K, H, W), dtype=jnp.float32) * 2.0

    decoder = DecodeSPM(input_size=64, sigma=1, conf_threshold=0.8, pred=True)
    root_joints, keypoints_joint = decoder(x)

    assert root_joints.ndim == 2 and root_joints.shape[-1] == 3
    if root_joints.shape[0] > 0:
        assert keypoints_joint.shape == (root_joints.shape[0], K, 3)
    print("KERNEL_OK")
</pallas_src>

<mosaic_0001>
module attributes {stable_mosaic.version = 11 : i64} {
  func.func @_spm_act_kernel(%arg0: i32, %arg1: memref<1x256xf32, #tpu.memory_space<vmem>>, %arg2: memref<14x256xf32, #tpu.memory_space<vmem>>, %arg3: memref<1x256xf32, #tpu.memory_space<vmem>>, %arg4: memref<14x256xf32, #tpu.memory_space<vmem>>) attributes {dimension_semantics = [#tpu.dimension_semantics<arbitrary>], iteration_bounds = array<i64: 1>, scalar_prefetch = 0 : i64, scratch_operands = 0 : i64, tpu.core_type = #tpu.core_type<tc>, window_params = [{pipeline_mode = #tpu.pipeline_mode<synchronous>, transform_indices = @transform_0, window_bounds = array<i64: 1, 256>}, {pipeline_mode = #tpu.pipeline_mode<synchronous>, transform_indices = @transform_1, window_bounds = array<i64: 14, 256>}, {pipeline_mode = #tpu.pipeline_mode<synchronous>, transform_indices = @transform_2, window_bounds = array<i64: 1, 256>}, {pipeline_mode = #tpu.pipeline_mode<synchronous>, transform_indices = @transform_3, window_bounds = array<i64: 14, 256>}]} {
    %c0 = arith.constant 0 : index
    %c0_0 = arith.constant 0 : index
    %0 = vector.load %arg1[%c0, %c0_0] : memref<1x256xf32, #tpu.memory_space<vmem>>, vector<1x256xf32>
    %c0_1 = arith.constant 0 : index
    %c0_2 = arith.constant 0 : index
    %1 = vector.load %arg2[%c0_1, %c0_2] : memref<14x256xf32, #tpu.memory_space<vmem>>, vector<14x256xf32>
    %cst = arith.constant 0.000000e+00 : f32
    %2 = vector.broadcast %cst : f32 to vector<1x256xf32>
    %3 = arith.subf %2, %0 : vector<1x256xf32>
    %4 = math.exp %3 : vector<1x256xf32>
    %cst_3 = arith.constant 1.000000e+00 : f32
    %5 = vector.broadcast %cst_3 : f32 to vector<1x256xf32>
    %6 = arith.addf %5, %4 : vector<1x256xf32>
    %7 = tpu.reciprocal %6 : vector<1x256xf32> -> vector<1x256xf32>
    %c0_4 = arith.constant 0 : index
    %c0_5 = arith.constant 0 : index
    %8 = vector.load %arg3[%c0_4, %c0_5] : memref<1x256xf32, #tpu.memory_space<vmem>>, vector<1x256xf32>
    tpu.vector_store %arg3[%c0_4, %c0_5], %7 {strides = array<i32>} : memref<1x256xf32, #tpu.memory_space<vmem>>, vector<1x256xf32>,
    %9 = math.tanh %1 : vector<14x256xf32>
    %c0_6 = arith.constant 0 : index
    %c0_7 = arith.constant 0 : index
    %10 = vector.load %arg4[%c0_6, %c0_7] : memref<14x256xf32, #tpu.memory_space<vmem>>, vector<14x256xf32>
    tpu.vector_store %arg4[%c0_6, %c0_7], %9 {strides = array<i32>} : memref<14x256xf32, #tpu.memory_space<vmem>>, vector<14x256xf32>,
    return
  }
  func.func @transform_0(%arg0: i32) -> (i32, i32) {
    %c0_i32 = arith.constant 0 : i32
    %c0_i32_0 = arith.constant 0 : i32
    %c0_i32_1 = arith.constant 0 : i32
    return %c0_i32, %c0_i32_0 : i32, i32
  }
  func.func @transform_1(%arg0: i32) -> (i32, i32) {
    %c0_i32 = arith.constant 0 : i32
    %c0_i32_0 = arith.constant 0 : i32
    %c0_i32_1 = arith.constant 0 : i32
    return %c0_i32, %c0_i32_0 : i32, i32
  }
  func.func @transform_2(%arg0: i32) -> (i32, i32) {
    %c0_i32 = arith.constant 0 : i32
    %c0_i32_0 = arith.constant 0 : i32
    %c0_i32_1 = arith.constant 0 : i32
    return %c0_i32, %c0_i32_0 : i32, i32
  }
  func.func @transform_3(%arg0: i32) -> (i32, i32) {
    %c0_i32 = arith.constant 0 : i32
    %c0_i32_0 = arith.constant 0 : i32
    %c0_i32_1 = arith.constant 0 : i32
    return %c0_i32, %c0_i32_0 : i32, i32
  }
}

</mosaic_0001>

<llo_original>
// kernel: squeeze.2
$region0: #{squeeze.2}
  %s0 = inlined_call_operand.vmem [shape: f32[1,1,16,16], index: 0, kind: input, shape index: {}]
  %s1 = inlined_call_operand.vmem [shape: f32[1,256], index: 1, kind: output, shape index: {}]
  $region1: #{squeeze.2} parent=0
    #allocation0 [shape = 'u8[8192]{0}', space=vmem, size = 0x2000, scoped, tag = 'scoped mem for output reshape']
    %s2 = smov 3
    %v3 = vld [vmem:[%s0] ss:$8 sm:%s2]
    %vm4 = vcmask 130048
    %5 = vst.msk [vmem:[#allocation0] ss:$8 sm:$0x3] %vm4, %v3
    %s6 = scalar_lea.vmem %s0, 7
    %s7 = smov 3
    %v8 = vld [vmem:[%s6] ss:$8 sm:%s7]
    %9 = vrot.lane.b32.xlu0 %v8, 112
    %v10 = vpop.permute.xlu0 %9
    %vm11 = vcmask 1048448
    %12 = vst.msk [vmem:[#allocation0] ss:$8 sm:$0x3] %vm11, %v10
    %s13 = scalar_lea.vmem %s0, 6
    %s14 = smov 3
    %v15 = vld [vmem:[%s13] ss:$8 sm:%s14]
    %16 = vrot.lane.b32.xlu0 %v15, 96
    %v17 = vpop.permute.xlu0 %16
    %vm18 = vcmask 917248
    %19 = vst.msk [vmem:[#allocation0] ss:$8 sm:$0x3] %vm18, %v17
    %s20 = scalar_lea.vmem %s0, 5
    %s21 = smov 3
    %v22 = vld [vmem:[%s20] ss:$8 sm:%s21]
    %23 = vrot.lane.b32.xlu0 %v22, 80
    %v24 = vpop.permute.xlu0 %23
    %vm25 = vcmask 786048
    %26 = vst.msk [vmem:[#allocation0] ss:$8 sm:$0x3] %vm25, %v24
    %s27 = scalar_lea.vmem %s0, 4
    %s28 = smov 3
    %v29 = vld [vmem:[%s27] ss:$8 sm:%s28]
    %30 = vrot.lane.b32.xlu0 %v29, 64
    %v31 = vpop.permute.xlu0 %30
    %vm32 = vcmask 654848
    %33 = vst.msk [vmem:[#allocation0] ss:$8 sm:$0x3] %vm32, %v31
    %s34 = scalar_lea.vmem %s0, 3
    %s35 = smov 3
    %v36 = vld [vmem:[%s34] ss:$8 sm:%s35]
    %37 = vrot.lane.b32.xlu0 %v36, 48
    %v38 = vpop.permute.xlu0 %37
    %vm39 = vcmask 523648
    %40 = vst.msk [vmem:[#allocation0] ss:$8 sm:$0x3] %vm39, %v38
    %s41 = scalar_lea.vmem %s0, 2
    %s42 = smov 3
    %v43 = vld [vmem:[%s41] ss:$8 sm:%s42]
    %44 = vrot.lane.b32.xlu0 %v43, 32
    %v45 = vpop.permute.xlu0 %44
    %vm46 = vcmask 392448
    %47 = vst.msk [vmem:[#allocation0] ss:$8 sm:$0x3] %vm46, %v45
    %s48 = scalar_lea.vmem %s0, 1
    %s49 = smov 3
    %v50 = vld [vmem:[%s48] ss:$8 sm:%s49]
    %51 = vrot.lane.b32.xlu0 %v50, 16
    %v52 = vpop.permute.xlu0 %51
    %vm53 = vcmask 261248
    %54 = vst.msk [vmem:[#allocation0] ss:$8 sm:$0x3] %vm53, %v52
    %s56 = sshllo.u32 0, 1
    %v58 = vld [vmem:[#allocation0] sm:%s56]
    %s59 = sshllo.u32 0, 1
    %60 = vst [vmem:[%s1] sm:%s59] %v58
    %s61 = scalar_lea.vmem [#allocation0], 8
    %v62 = vld [vmem:[%s61] sm:%s56]
    %s63 = sshllo.u32 0, 1
    %s64 = scalar_lea.vmem %s1, 1
    %65 = vst [vmem:[%s64] sm:%s63] %v62

// kernel: squeeze.3
$region0: #{squeeze.3}
  %s0 = inlined_call_operand.vmem [shape: f32[1,14,16,16], index: 0, kind: input, shape index: {}]
  %s1 = inlined_call_operand.vmem [shape: f32[14,256], index: 1, kind: output, shape index: {}]
  %v2 = vld [vmem:[%s0] ss:$8 sm:$0xf]
  %v3 = vld [vmem:[%s0] ss:$8 sm:$0xf0]
  %vm4 = vcmask 1047556
  %v5 = vsel %vm4, %v3, %v2
  %vm6 = vcmask 130048
  %7 = vst.msk [vmem:[%s1] ss:$8 sm:$0x3] %vm6, %v5
  %s8 = scalar_lea.vmem %s1, 4294967281
  %9 = vst.msk [vmem:[%s8] ss:$8 sm:$0xc] %vm6, %v5
  %s10 = scalar_lea.vmem %s1, 4294967266
  %11 = vst.msk [vmem:[%s10] ss:$8 sm:$0x30] %vm6, %v5
  %s12 = scalar_lea.vmem %s1, 4294967251
  %13 = vst.msk [vmem:[%s12] ss:$8 sm:$0xc0] %vm6, %v5
  %s14 = scalar_lea.vmem %s0, 64
  %v15 = vld [vmem:[%s14] ss:$8 sm:$0xf]
  %s16 = scalar_lea.vmem %s0, 64
  %v17 = vld [vmem:[%s16] ss:$8 sm:$0xf0]
  %vm18 = vcmask 1047556
  %v19 = vsel %vm18, %v17, %v15
  %vm20 = vcmask 130048
  %s21 = scalar_lea.vmem %s1, 4
  %22 = vst.msk [vmem:[%s21] ss:$8 sm:$0x3] %vm20, %v19
  %s23 = scalar_lea.vmem %s1, 4294967285
  %24 = vst.msk [vmem:[%s23] ss:$8 sm:$0xc] %vm20, %v19
  %s25 = scalar_lea.vmem %s1, 4294967270
  %26 = vst.msk [vmem:[%s25] ss:$8 sm:$0x30] %vm20, %v19
  %s27 = scalar_lea.vmem %s1, 4294967255
  %28 = vst.msk [vmem:[%s27] ss:$8 sm:$0xc0] %vm20, %v19
  %s29 = scalar_lea.vmem %s0, 128
  %v30 = vld [vmem:[%s29] ss:$8 sm:$0xf]
  %s31 = scalar_lea.vmem %s0, 128
  %v32 = vld [vmem:[%s31] ss:$8 sm:$0xf0]
  %vm33 = vcmask 1047556
  %v34 = vsel %vm33, %v32, %v30
  %vm35 = vcmask 130048
  %s36 = scalar_lea.vmem %s1, 16
  %37 = vst.msk [vmem:[%s36] ss:$8 sm:$0x3] %vm35, %v34
  %s38 = scalar_lea.vmem %s1, 1
  %39 = vst.msk [vmem:[%s38] ss:$8 sm:$0xc] %vm35, %v34
  %s40 = scalar_lea.vmem %s1, 4294967282
  %41 = vst.msk [vmem:[%s40] ss:$8 sm:$0x30] %vm35, %v34
  %s42 = scalar_lea.vmem %s1, 4294967267
  %43 = vst.msk [vmem:[%s42] ss:$8 sm:$0xc0] %vm35, %v34
  %s44 = scalar_lea.vmem %s0, 192
  %v45 = vld [vmem:[%s44] ss:$8 sm:$0xf]
  %vm46 = vcmask 130048
  %s47 = scalar_lea.vmem %s1, 20
  %48 = vst.msk [vmem:[%s47] ss:$8 sm:$0x3] %vm46, %v45
  %s49 = scalar_lea.vmem %s1, 5
  %50 = vst.msk [vmem:[%s49] ss:$8 sm:$0xc] %vm46, %v45
  %s51 = scalar_lea.vmem %s0, 7
  %s52 = smov 3
  %v53 = vld [vmem:[%s51] ss:$16 sm:%s52]
  %s54 = scalar_lea.vmem %s0, 7
  %s55 = smov 12
  %v56 = vld [vmem:[%s54] ss:$16 sm:%s55]
  %vm57 = vcmask 1043458
  %v58 = vsel %vm57, %v56, %v53
  %s59 = scalar_lea.vmem %s0, 7
  %s60 = smov 48
  %v61 = vld [vmem:[%s59] ss:$16 sm:%s60]
  %vm62 = vcmask 1045508
  %v63 = vsel %vm62, %v61, %v58
  %s64 = scalar_lea.vmem %s0, 7
  %s65 = smov 192
  %v66 = vld [vmem:[%s64] ss:$16 sm:%s65]
  %vm67 = vcmask 1047558
  %v68 = vsel %vm67, %v66, %v63
  %69 = vrot.lane.b32.xlu0 %v68, 112
  %v70 = vpop.permute.xlu0 %69
  %vm71 = vcmask 1048448
  %72 = vst.msk [vmem:[%s1] sm:$0xff] %vm71, %v70
  %s73 = scalar_lea.vmem %s0, 15
  %s74 = smov 3
  %v75 = vld [vmem:[%s73] ss:$16 sm:%s74]
  %s76 = scalar_lea.vmem %s0, 15
  %s77 = smov 12
  %v78 = vld [vmem:[%s76] ss:$16 sm:%s77]
  %vm79 = vcmask 1043458
  %v80 = vsel %vm79, %v78, %v75
  %s81 = scalar_lea.vmem %s0, 15
  %s82 = smov 48
  %v83 = vld [vmem:[%s81] ss:$16 sm:%s82]
  %vm84 = vcmask 1045508
  %v85 = vsel %vm84, %v83, %v80
  %s86 = scalar_lea.vmem %s0, 15
  %s87 = smov 192
  %v88 = vld [vmem:[%s86] ss:$16 sm:%s87]
  %vm89 = vcmask 1047558
  %v90 = vsel %vm89, %v88, %v85
  %91 = vrot.lane.b32.xlu0 %v90, 112
  %v92 = vpop.permute.xlu0 %91
  %vm93 = vcmask 1048448
  %s94 = scalar_lea.vmem %s1, 8
  %95 = vst.msk [vmem:[%s94] sm:$0xff] %vm93, %v92
  %s96 = scalar_lea.vmem %s0, 135
  %s97 = smov 3
  %v98 = vld [vmem:[%s96] ss:$16 sm:%s97]
  %s99 = scalar_lea.vmem %s0, 135
  %s100 = smov 12
  %v101 = vld [vmem:[%s99] ss:$16 sm:%s100]
  %vm102 = vcmask 1043458
  %v103 = vsel %vm102, %v101, %v98
  %s104 = scalar_lea.vmem %s0, 135
  %s105 = smov 48
  %v106 = vld [vmem:[%s104] ss:$16 sm:%s105]
  %vm107 = vcmask 1045508
  %v108 = vsel %vm107, %v106, %v103
  %s109 = scalar_lea.vmem %s0, 47
  %s110 = smov 192
  %v111 = vld [vmem:[%s109] ss:$16 sm:%s110]
  %vm112 = vcmask 1047558
  %v113 = vsel %vm112, %v111, %v108
  %114 = vrot.lane.b32.xlu0 %v113, 112
  %v115 = vpop.permute.xlu0 %114
  %vm116 = vcmask 1048448
  %s117 = scalar_lea.vmem %s1, 16
  %118 = vst.msk [vmem:[%s117] sm:$0x3f] %vm116, %v115
  %s119 = scalar_lea.vmem %s1, 18
  %120 = vst.msk [vmem:[%s119] sm:$0xc0] %vm116, %v115
  %s121 = scalar_lea.vmem %s0, 175
  %s122 = smov 3
  %v123 = vld [vmem:[%s121] ss:$16 sm:%s122]
  %s124 = scalar_lea.vmem %s0, 175
  %s125 = smov 12
  %v126 = vld [vmem:[%s124] ss:$16 sm:%s125]
  %vm127 = vcmask 1043458
  %v128 = vsel %vm127, %v126, %v123
  %129 = vrot.lane.b32.xlu0 %v128, 112
  %v130 = vpop.permute.xlu0 %129
  %vm131 = vcmask 1048448
  %s132 = scalar_lea.vmem %s1, 26
  %133 = vst.msk [vmem:[%s132] sm:$0xf] %vm131, %v130
  %s134 = scalar_lea.vmem %s0, 6
  %s135 = smov 3
  %v136 = vld [vmem:[%s134] ss:$16 sm:%s135]
  %s137 = scalar_lea.vmem %s0, 6
  %s138 = smov 12
  %v139 = vld [vmem:[%s137] ss:$16 sm:%s138]
  %vm140 = vcmask 1043458
  %v141 = vsel %vm140, %v139, %v136
  %s142 = scalar_lea.vmem %s0, 6
  %s143 = smov 48
  %v144 = vld [vmem:[%s142] ss:$16 sm:%s143]
  %vm145 = vcmask 1045508
  %v146 = vsel %vm145, %v144, %v141
  %s147 = scalar_lea.vmem %s0, 6
  %s148 = smov 192
  %v149 = vld [vmem:[%s147] ss:$16 sm:%s148]
  %vm150 = vcmask 1047558
  %v151 = vsel %vm150, %v149, %v146
  %152 = vrot.lane.b32.xlu0 %v151, 96
  %v153 = vpop.permute.xlu0 %152
  %vm154 = vcmask 917248
  %155 = vst.msk [vmem:[%s1] sm:$0xff] %vm154, %v153
  %s156 = scalar_lea.vmem %s0, 14
  %s157 = smov 3
  %v158 = vld [vmem:[%s156] ss:$16 sm:%s157]
  %s159 = scalar_lea.vmem %s0, 14
  %s160 = smov 12
  %v161 = vld [vmem:[%s159] ss:$16 sm:%s160]
  %vm162 = vcmask 1043458
  %v163 = vsel %vm162, %v161, %v158
  %s164 = scalar_lea.vmem %s0, 14
  %s165 = smov 48
  %v166 = vld [vmem:[%s164] ss:$16 sm:%s165]
  %vm167 = vcmask 1045508
  %v168 = vsel %vm167, %v166, %v163
  %s169 = scalar_lea.vmem %s0, 14
  %s170 = smov 192
  %v171 = vld [vmem:[%s169] ss:$16 sm:%s170]
  %vm172 = vcmask 1047558
  %v173 = vsel %vm172, %v171, %v168
  %174 = vrot.lane.b32.xlu0 %v173, 96
  %v175 = vpop.permute.xlu0 %174
  %vm176 = vcmask 917248
  %s177 = scalar_lea.vmem %s1, 8
  %178 = vst.msk [vmem:[%s177] sm:$0xff] %vm176, %v175
  %s179 = scalar_lea.vmem %s0, 134
  %s180 = smov 3
  %v181 = vld [vmem:[%s179] ss:$16 sm:%s180]
  %s182 = scalar_lea.vmem %s0, 134
  %s183 = smov 12
  %v184 = vld [vmem:[%s182] ss:$16 sm:%s183]
  %vm185 = vcmask 1043458
  %v186 = vsel %vm185, %v184, %v181
  %s187 = scalar_lea.vmem %s0, 134
  %s188 = smov 48
  %v189 = vld [vmem:[%s187] ss:$16 sm:%s188]
  %vm190 = vcmask 1045508
  %v191 = vsel %vm190, %v189, %v186
  %s192 = scalar_lea.vmem %s0, 46
  %s193 = smov 192
  %v194 = vld [vmem:[%s192] ss:$16 sm:%s193]
  %vm195 = vcmask 1047558
  %v196 = vsel %vm195, %v194, %v191
  %197 = vrot.lane.b32.xlu0 %v196, 96
  %v198 = vpop.permute.xlu0 %197
  %vm199 = vcmask 917248
  %s200 = scalar_lea.vmem %s1, 16
  %201 = vst.msk [vmem:[%s200] sm:$0x3f] %vm199, %v198
  %s202 = scalar_lea.vmem %s1, 18
  %203 = vst.msk [vmem:[%s202] sm:$0xc0] %vm199, %v198
  %s204 = scalar_lea.vmem %s0, 174
  %s205 = smov 3
  %v206 = vld [vmem:[%s204] ss:$16 sm:%s205]
  %s207 = scalar_lea.vmem %s0, 174
  %s208 = smov 12
  %v209 = vld [vmem:[%s207] ss:$16 sm:%s208]
  %vm210 = vcmask 1043458
  %v211 = vsel %vm210, %v209, %v206
  %212 = vrot.lane.b32.xlu0 %v211, 96
  %v213 = vpop.permute.xlu0 %212
  %vm214 = vcmask 917248
  %s215 = scalar_lea.vmem %s1, 26
  %216 = vst.msk [vmem:[%s215] sm:$0xf] %vm214, %v213
  %s217 = scalar_lea.vmem %s0, 5
  %s218 = smov 3
  %v219 = vld [vmem:[%s217] ss:$16 sm:%s218]
  %s220 = scalar_lea.vmem %s0, 5
  %s221 = smov 12
  %v222 = vld [vmem:[%s220] ss:$16 sm:%s221]
  %vm223 = vcmask 1043458
  %v224 = vsel %vm223, %v222, %v219
  %s225 = scalar_lea.vmem %s0, 5
  %s226 = smov 48
  %v227 = vld [vmem:[%s225] ss:$16 sm:%s226]
  %vm228 = vcmask 1045508
  %v229 = vsel %vm228, %v227, %v224
  %s230 = scalar_lea.vmem %s0, 5
  %s231 = smov 192
  %v232 = vld [vmem:[%s230] ss:$16 sm:%s231]
  %vm233 = vcmask 1047558
  %v234 = vsel %vm233, %v232, %v229
  %235 = vrot.lane.b32.xlu0 %v234, 80
  %v236 = vpop.permute.xlu0 %235
  %vm237 = vcmask 786048
  %238 = vst.msk [vmem:[%s1] sm:$0xff] %vm237, %v236
  %s239 = scalar_lea.vmem %s0, 13
  %s240 = smov 3
  %v241 = vld [vmem:[%s239] ss:$16 sm:%s240]
  %s242 = scalar_lea.vmem %s0, 13
  %s243 = smov 12
  %v244 = vld [vmem:[%s242] ss:$16 sm:%s243]
  %vm245 = vcmask 1043458
  %v246 = vsel %vm245, %v244, %v241
  %s247 = scalar_lea.vmem %s0, 13
  %s248 = smov 48
  %v249 = vld [vmem:[%s247] ss:$16 sm:%s248]
  %vm250 = vcmask 1045508
  %v251 = vsel %vm250, %v249, %v246
  %s252 = scalar_lea.vmem %s0, 13
  %s253 = smov 192
  %v254 = vld [vmem:[%s252] ss:$16 sm:%s253]
  %vm255 = vcmask 1047558
  %v256 = vsel %vm255, %v254, %v251
  %257 = vrot.lane.b32.xlu0 %v256, 80
  %v258 = vpop.permute.xlu0 %257
  %vm259 = vcmask 786048
  %s260 = scalar_lea.vmem %s1, 8
  %261 = vst.msk [vmem:[%s260] sm:$0xff] %vm259, %v258
  %s262 = scalar_lea.vmem %s0, 133
  %s263 = smov 3
  %v264 = vld [vmem:[%s262] ss:$16 sm:%s263]
  %s265 = scalar_lea.vmem %s0, 133
  %s266 = smov 12
  %v267 = vld [vmem:[%s265] ss:$16 sm:%s266]
  %vm268 = vcmask 1043458
  %v269 = vsel %vm268, %v267, %v264
  %s270 = scalar_lea.vmem %s0, 133
  %s271 = smov 48
  %v272 = vld [vmem:[%s270] ss:$16 sm:%s271]
  %vm273 = vcmask 1045508
  %v274 = vsel %vm273, %v272, %v269
  %s275 = scalar_lea.vmem %s0, 45
  %s276 = smov 192
  %v277 = vld [vmem:[%s275] ss:$16 sm:%s276]
  %vm278 = vcmask 1047558
  %v279 = vsel %vm278, %v277, %v274
  %280 = vrot.lane.b32.xlu0 %v279, 80
  %v281 = vpop.permute.xlu0 %280
  %vm282 = vcmask 786048
  %s283 = scalar_lea.vmem %s1, 16
  %284 = vst.msk [vmem:[%s283] sm:$0x3f] %vm282, %v281
  %s285 = scalar_lea.vmem %s1, 18
  %286 = vst.msk [vmem:[%s285] sm:$0xc0] %vm282, %v281
  %s287 = scalar_lea.vmem %s0, 173
  %s288 = smov 3
  %v289 = vld [vmem:[%s287] ss:$16 sm:%s288]
  %s290 = scalar_lea.vmem %s0, 173
  %s291 = smov 12
  %v292 = vld [vmem:[%s290] ss:$16 sm:%s291]
  %vm293 = vcmask 1043458
  %v294 = vsel %vm293, %v292, %v289
  %295 = vrot.lane.b32.xlu0 %v294, 80
  %v296 = vpop.permute.xlu0 %295
  %vm297 = vcmask 786048
  %s298 = scalar_lea.vmem %s1, 26
  %299 = vst.msk [vmem:[%s298] sm:$0xf] %vm297, %v296
  %s300 = scalar_lea.vmem %s0, 4
  %s301 = smov 3
  %v302 = vld [vmem:[%s300] ss:$16 sm:%s301]
  %s303 = scalar_lea.vmem %s0, 4
  %s304 = smov 12
  %v305 = vld [vmem:[%s303] ss:$16 sm:%s304]
  %vm306 = vcmask 1043458
  %v307 = vsel %vm306, %v305, %v302
  %s308 = scalar_lea.vmem %s0, 4
  %s309 = smov 48
  %v310 = vld [vmem:[%s308] ss:$16 sm:%s309]
  %vm311 = vcmask 1045508
  %v312 = vsel %vm311, %v310, %v307
  %s313 = scalar_lea.vmem %s0, 4
  %s314 = smov 192
  %v315 = vld [vmem:[%s313] ss:$16 sm:%s314]
  %vm316 = vcmask 1047558
  %v317 = vsel %vm316, %v315, %v312
  %318 = vrot.lane.b32.xlu0 %v317, 64
  %v319 = vpop.permute.xlu0 %318
  %vm320 = vcmask 654848
  %321 = vst.msk [vmem:[%s1] sm:$0xff] %vm320, %v319
  %s322 = scalar_lea.vmem %s0, 12
  %s323 = smov 3
  %v324 = vld [vmem:[%s322] ss:$16 sm:%s323]
  %s325 = scalar_lea.vmem %s0, 12
  %s326 = smov 12
  %v327 = vld [vmem:[%s325] ss:$16 sm:%s326]
  %vm328 = vcmask 1043458
  %v329 = vsel %vm328, %v327, %v324
  %s330 = scalar_lea.vmem %s0, 12
  %s331 = smov 48
  %v332 = vld [vmem:[%s330] ss:$16 sm:%s331]
  %vm333 = vcmask 1045508
  %v334 = vsel %vm333, %v332, %v329
  %s335 = scalar_lea.vmem %s0, 12
  %s336 = smov 192
  %v337 = vld [vmem:[%s335] ss:$16 sm:%s336]
  %vm338 = vcmask 1047558
  %v339 = vsel %vm338, %v337, %v334
  %340 = vrot.lane.b32.xlu0 %v339, 64
  %v341 = vpop.permute.xlu0 %340
  %vm342 = vcmask 654848
  %s343 = scalar_lea.vmem %s1, 8
  %344 = vst.msk [vmem:[%s343] sm:$0xff] %vm342, %v341
  %s345 = scalar_lea.vmem %s0, 132
  %s346 = smov 3
  %v347 = vld [vmem:[%s345] ss:$16 sm:%s346]
  %s348 = scalar_lea.vmem %s0, 132
  %s349 = smov 12
  %v350 = vld [vmem:[%s348] ss:$16 sm:%s349]
  %vm351 = vcmask 1043458
  %v352 = vsel %vm351, %v350, %v347
  %s353 = scalar_lea.vmem %s0, 132
  %s354 = smov 48
  %v355 = vld [vmem:[%s353] ss:$16 sm:%s354]
  %vm356 = vcmask 1045508
  %v357 = vsel %vm356, %v355, %v352
  %s358 = scalar_lea.vmem %s0, 44
  %s359 = smov 192
  %v360 = vld [vmem:[%s358] ss:$16 sm:%s359]
  %vm361 = vcmask 1047558
  %v362 = vsel %vm361, %v360, %v357
  %363 = vrot.lane.b32.xlu0 %v362, 64
  %v364 = vpop.permute.xlu0 %363
  %vm365 = vcmask 654848
  %s366 = scalar_lea.vmem %s1, 16
  %367 = vst.msk [vmem:[%s366] sm:$0x3f] %vm365, %v364
  %s368 = scalar_lea.vmem %s1, 18
  %369 = vst.msk [vmem:[%s368] sm:$0xc0] %vm365, %v364
  %s370 = scalar_lea.vmem %s0, 172
  %s371 = smov 3
  %v372 = vld [vmem:[%s370] ss:$16 sm:%s371]
  %s373 = scalar_lea.vmem %s0, 172
  %s374 = smov 12
  %v375 = vld [vmem:[%s373] ss:$16 sm:%s374]
  %vm376 = vcmask 1043458
  %v377 = vsel %vm376, %v375, %v372
  %378 = vrot.lane.b32.xlu0 %v377, 64
  %v379 = vpop.permute.xlu0 %378
  %vm380 = vcmask 654848
  %s381 = scalar_lea.vmem %s1, 26
  %382 = vst.msk [vmem:[%s381] sm:$0xf] %vm380, %v379
  %s383 = scalar_lea.vmem %s0, 3
  %s384 = smov 3
  %v385 = vld [vmem:[%s383] ss:$16 sm:%s384]
  %s386 = scalar_lea.vmem %s0, 3
  %s387 = smov 12
  %v388 = vld [vmem:[%s386] ss:$16 sm:%s387]
  %vm389 = vcmask 1043458
  %v390 = vsel %vm389, %v388, %v385
  %s391 = scalar_lea.vmem %s0, 3
  %s392 = smov 48
  %v393 = vld [vmem:[%s391] ss:$16 sm:%s392]
  %vm394 = vcmask 1045508
  %v395 = vsel %vm394, %v393, %v390
  %s396 = scalar_lea.vmem %s0, 3
  %s397 = smov 192
  %v398 = vld [vmem:[%s396] ss:$16 sm:%s397]
  %vm399 = vcmask 1047558
  %v400 = vsel %vm399, %v398, %v395
  %401 = vrot.lane.b32.xlu0 %v400, 48
  %v402 = vpop.permute.xlu0 %401
  %vm403 = vcmask 523648
  %404 = vst.msk [vmem:[%s1] sm:$0xff] %vm403, %v402
  %s405 = scalar_lea.vmem %s0, 11
  %s406 = smov 3
  %v407 = vld [vmem:[%s405] ss:$16 sm:%s406]
  %s408 = scalar_lea.vmem %s0, 11
  %s409 = smov 12
  %v410 = vld [vmem:[%s408] ss:$16 sm:%s409]
  %vm411 = vcmask 1043458
  %v412 = vsel %vm411, %v410, %v407
  %s413 = scalar_lea.vmem %s0, 11
  %s414 = smov 48
  %v415 = vld [vmem:[%s413] ss:$16 sm:%s414]
  %vm416 = vcmask 1045508
  %v417 = vsel %vm416, %v415, %v412
  %s418 = scalar_lea.vmem %s0, 11
  %s419 = smov 192
  %v420 = vld [vmem:[%s418] ss:$16 sm:%s419]
  %vm421 = vcmask 1047558
  %v422 = vsel %vm421, %v420, %v417
  %423 = vrot.lane.b32.xlu0 %v422, 48
  %v424 = vpop.permute.xlu0 %423
  %vm425 = vcmask 523648
  %s426 = scalar_lea.vmem %s1, 8
  %427 = vst.msk [vmem:[%s426] sm:$0xff] %vm425, %v424
  %s428 = scalar_lea.vmem %s0, 131
  %s429 = smov 3
  %v430 = vld [vmem:[%s428] ss:$16 sm:%s429]
  %s431 = scalar_lea.vmem %s0, 131
  %s432 = smov 12
  %v433 = vld [vmem:[%s431] ss:$16 sm:%s432]
  %vm434 = vcmask 1043458
  %v435 = vsel %vm434, %v433, %v430
  %s436 = scalar_lea.vmem %s0, 131
  %s437 = smov 48
  %v438 = vld [vmem:[%s436] ss:$16 sm:%s437]
  %vm439 = vcmask 1045508
  %v440 = vsel %vm439, %v438, %v435
  %s441 = scalar_lea.vmem %s0, 43
  %s442 = smov 192
  %v443 = vld [vmem:[%s441] ss:$16 sm:%s442]
  %vm444 = vcmask 1047558
  %v445 = vsel %vm444, %v443, %v440
  %446 = vrot.lane.b32.xlu0 %v445, 48
  %v447 = vpop.permute.xlu0 %446
  %vm448 = vcmask 523648
  %s449 = scalar_lea.vmem %s1, 16
  %450 = vst.msk [vmem:[%s449] sm:$0x3f] %vm448, %v447
  %s451 = scalar_lea.vmem %s1, 18
  %452 = vst.msk [vmem:[%s451] sm:$0xc0] %vm448, %v447
  %s453 = scalar_lea.vmem %s0, 171
  %s454 = smov 3
  %v455 = vld [vmem:[%s453] ss:$16 sm:%s454]
  %s456 = scalar_lea.vmem %s0, 171
  %s457 = smov 12
  %v458 = vld [vmem:[%s456] ss:$16 sm:%s457]
  %vm459 = vcmask 1043458
  %v460 = vsel %vm459, %v458, %v455
  %461 = vrot.lane.b32.xlu0 %v460, 48
  %v462 = vpop.permute.xlu0 %461
  %vm463 = vcmask 523648
  %s464 = scalar_lea.vmem %s1, 26
  %465 = vst.msk [vmem:[%s464] sm:$0xf] %vm463, %v462
  %s466 = scalar_lea.vmem %s0, 2
  %s467 = smov 3
  %v468 = vld [vmem:[%s466] ss:$16 sm:%s467]
  %s469 = scalar_lea.vmem %s0, 2
  %s470 = smov 12
  %v471 = vld [vmem:[%s469] ss:$16 sm:%s470]
  %vm472 = vcmask 1043458
  %v473 = vsel %vm472, %v471, %v468
  %s474 = scalar_lea.vmem %s0, 2
  %s475 = smov 48
  %v476 = vld [vmem:[%s474] ss:$16 sm:%s475]
  %vm477 = vcmask 1045508
  %v478 = vsel %vm477, %v476, %v473
  %s479 = scalar_lea.vmem %s0, 2
  %s480 = smov 192
  %v481 = vld [vmem:[%s479] ss:$16 sm:%s480]
  %vm482 = vcmask 1047558
  %v483 = vsel %vm482, %v481, %v478
  %484 = vrot.lane.b32.xlu0 %v483, 32
  %v485 = vpop.permute.xlu0 %484
  %vm486 = vcmask 392448
  %487 = vst.msk [vmem:[%s1] sm:$0xff] %vm486, %v485
  %s488 = scalar_lea.vmem %s0, 10
  %s489 = smov 3
  %v490 = vld [vmem:[%s488] ss:$16 sm:%s489]
  %s491 = scalar_lea.vmem %s0, 10
  %s492 = smov 12
  %v493 = vld [vmem:[%s491] ss:$16 sm:%s492]
  %vm494 = vcmask 1043458
  %v495 = vsel %vm494, %v493, %v490
  %s496 = scalar_lea.vmem %s0, 10
  %s497 = smov 48
  %v498 = vld [vmem:[%s496] ss:$16 sm:%s497]
  %vm499 = vcmask 1045508
  %v500 = vsel %vm499, %v498, %v495
  %s501 = scalar_lea.vmem %s0, 10
  %s502 = smov 192
  %v503 = vld [vmem:[%s501] ss:$16 sm:%s502]
  %vm504 = vcmask 1047558
  %v505 = vsel %vm504, %v503, %v500
  %506 = vrot.lane.b32.xlu0 %v505, 32
  %v507 = vpop.permute.xlu0 %506
  %vm508 = vcmask 392448
  %s509 = scalar_lea.vmem %s1, 8
  %510 = vst.msk [vmem:[%s509] sm:$0xff] %vm508, %v507
  %s511 = scalar_lea.vmem %s0, 130
  %s512 = smov 3
  %v513 = vld [vmem:[%s511] ss:$16 sm:%s512]
  %s514 = scalar_lea.vmem %s0, 130
  %s515 = smov 12
  %v516 = vld [vmem:[%s514] ss:$16 sm:%s515]
  %vm517 = vcmask 1043458
  %v518 = vsel %vm517, %v516, %v513
  %s519 = scalar_lea.vmem %s0, 130
  %s520 = smov 48
  %v521 = vld [vmem:[%s519] ss:$16 sm:%s520]
  %vm522 = vcmask 1045508
  %v523 = vsel %vm522, %v521, %v518
  %s524 = scalar_lea.vmem %s0, 42
  %s525 = smov 192
  %v526 = vld [vmem:[%s524] ss:$16 sm:%s525]
  %vm527 = vcmask 1047558
  %v528 = vsel %vm527, %v526, %v523
  %529 = vrot.lane.b32.xlu0 %v528, 32
  %v530 = vpop.permute.xlu0 %529
  %vm531 = vcmask 392448
  %s532 = scalar_lea.vmem %s1, 16
  %533 = vst.msk [vmem:[%s532] sm:$0x3f] %vm531, %v530
  %s534 = scalar_lea.vmem %s1, 18
  %535 = vst.msk [vmem:[%s534] sm:$0xc0] %vm531, %v530
  %s536 = scalar_lea.vmem %s0, 170
  %s537 = smov 3
  %v538 = vld [vmem:[%s536] ss:$16 sm:%s537]
  %s539 = scalar_lea.vmem %s0, 170
  %s540 = smov 12
  %v541 = vld [vmem:[%s539] ss:$16 sm:%s540]
  %vm542 = vcmask 1043458
  %v543 = vsel %vm542, %v541, %v538
  %544 = vrot.lane.b32.xlu0 %v543, 32
  %v545 = vpop.permute.xlu0 %544
  %vm546 = vcmask 392448
  %s547 = scalar_lea.vmem %s1, 26
  %548 = vst.msk [vmem:[%s547] sm:$0xf] %vm546, %v545
  %s549 = scalar_lea.vmem %s0, 1
  %s550 = smov 3
  %v551 = vld [vmem:[%s549] ss:$16 sm:%s550]
  %s552 = scalar_lea.vmem %s0, 1
  %s553 = smov 12
  %v554 = vld [vmem:[%s552] ss:$16 sm:%s553]
  %vm555 = vcmask 1043458
  %v556 = vsel %vm555, %v554, %v551
  %s557 = scalar_lea.vmem %s0, 1
  %s558 = smov 48
  %v559 = vld [vmem:[%s557] ss:$16 sm:%s558]
  %vm560 = vcmask 1045508
  %v561 = vsel %vm560, %v559, %v556
  %s562 = scalar_lea.vmem %s0, 1
  %s563 = smov 192
  %v564 = vld [vmem:[%s562] ss:$16 sm:%s563]
  %vm565 = vcmask 1047558
  %v566 = vsel %vm565, %v564, %v561
  %567 = vrot.lane.b32.xlu0 %v566, 16
  %v568 = vpop.permute.xlu0 %567
  %vm569 = vcmask 261248
  %570 = vst.msk [vmem:[%s1] sm:$0xff] %vm569, %v568
  %s571 = scalar_lea.vmem %s0, 9
  %s572 = smov 3
  %v573 = vld [vmem:[%s571] ss:$16 sm:%s572]
  %s574 = scalar_lea.vmem %s0, 9
  %s575 = smov 12
  %v576 = vld [vmem:[%s574] ss:$16 sm:%s575]
  %vm577 = vcmask 1043458
  %v578 = vsel %vm577, %v576, %v573
  %s579 = scalar_lea.vmem %s0, 9
  %s580 = smov 48
  %v581 = vld [vmem:[%s579] ss:$16 sm:%s580]
  %vm582 = vcmask 1045508
  %v583 = vsel %vm582, %v581, %v578
  %s584 = scalar_lea.vmem %s0, 9
  %s585 = smov 192
  %v586 = vld [vmem:[%s584] ss:$16 sm:%s585]
  %vm587 = vcmask 1047558
  %v588 = vsel %vm587, %v586, %v583
  %589 = vrot.lane.b32.xlu0 %v588, 16
  %v590 = vpop.permute.xlu0 %589
  %vm591 = vcmask 261248
  %s592 = scalar_lea.vmem %s1, 8
  %593 = vst.msk [vmem:[%s592] sm:$0xff] %vm591, %v590
  %s594 = scalar_lea.vmem %s0, 129
  %s595 = smov 3
  %v596 = vld [vmem:[%s594] ss:$16 sm:%s595]
  %s597 = scalar_lea.vmem %s0, 129
  %s598 = smov 12
  %v599 = vld [vmem:[%s597] ss:$16 sm:%s598]
  %vm600 = vcmask 1043458
  %v601 = vsel %vm600, %v599, %v596
  %s602 = scalar_lea.vmem %s0, 129
  %s603 = smov 48
  %v604 = vld [vmem:[%s602] ss:$16 sm:%s603]
  %vm605 = vcmask 1045508
  %v606 = vsel %vm605, %v604, %v601
  %s607 = scalar_lea.vmem %s0, 41
  %s608 = smov 192
  %v609 = vld [vmem:[%s607] ss:$16 sm:%s608]
  %vm610 = vcmask 1047558
  %v611 = vsel %vm610, %v609, %v606
  %612 = vrot.lane.b32.xlu0 %v611, 16
  %v613 = vpop.permute.xlu0 %612
  %vm614 = vcmask 261248
  %s615 = scalar_lea.vmem %s1, 16
  %616 = vst.msk [vmem:[%s615] sm:$0x3f] %vm614, %v613
  %s617 = scalar_lea.vmem %s1, 18
  %618 = vst.msk [vmem:[%s617] sm:$0xc0] %vm614, %v613
  %s619 = scalar_lea.vmem %s0, 169
  %s620 = smov 3
  %v621 = vld [vmem:[%s619] ss:$16 sm:%s620]
  %s622 = scalar_lea.vmem %s0, 169
  %s623 = smov 12
  %v624 = vld [vmem:[%s622] ss:$16 sm:%s623]
  %vm625 = vcmask 1043458
  %v626 = vsel %vm625, %v624, %v621
  %627 = vrot.lane.b32.xlu0 %v626, 16
  %v628 = vpop.permute.xlu0 %627
  %vm629 = vcmask 261248
  %s630 = scalar_lea.vmem %s1, 26
  %631 = vst.msk [vmem:[%s630] sm:$0xf] %vm629, %v628

// kernel: spm_activations.1
$region0: #{spm_activations.1}
  #allocation0 [shape = 'u32[]', space=smem, size = 0x4, offset = 0x4, fixed_abs, tag = 'smem constant byte address 0x4 - core index']
  #allocation1 [shape = 'u32[144,128]{1,0:T(1,128)}', space=vmem, size = 0x12000, scoped, tag = 'internal scratch']
  %s0 = inlined_call_operand.vmem [shape: f32[1,256], index: 0, kind: input, shape index: {}]
  %s1 = inlined_call_operand.vmem [shape: f32[14,256], index: 1, kind: input, shape index: {}]
  %s2 = inlined_call_operand.hbm [shape: f32[1,256], index: 2, kind: output, shape index: {0}]
  %s3 = inlined_call_operand.hbm [shape: f32[14,256], index: 3, kind: output, shape index: {1}]
  %4 = xla_tuple %s2, %s3
  %s5 = sld [smem:[#allocation0]]
  $region26: #{spm_activations.1} parent=0
    _
  %s7 = ssub.s32 1, %s5
  %s8 = scalar_select 0, %s7, %s5
  $region1: #{spm_activations.1} parent=0
    #allocation2 [shape = 'u8[1024]{0}', space=vmem, size = 0x400, scoped, tag = 'output window, operand 0, single buffered']
    #allocation3 [shape = 's32[1]{0}', space=sflag, size = 0x4, scoped, tag = 'scoped memory for spm_activations.1']
    #allocation4 [shape = 'u8[16384]{0}', space=vmem, size = 0x4000, scoped, tag = 'output window, operand 1, single buffered']
    #allocation5 [shape = 's32[1]{0}', space=sflag, size = 0x4, scoped, tag = 'scoped memory for spm_activations.1']
    %9 = vsyncpa [#allocation3], 0
    %10 = vsyncpa [#allocation5], 0
    // Predicated region
    $region2: #{spm_activations.1} parent=1 // pred_check
      _
    $region3: #{spm_activations.1} parent=1 // pred_check_branch
      %12 = sbr.rel (0) target = $region5
    $region4: #{spm_activations.1} parent=1 // pred_region
      _
    $region5: #{spm_activations.1} parent=1 // pred_fallthru
      _
    // Predicated region
    $region6: #{spm_activations.1} parent=1 // pred_check
      _
    $region7: #{spm_activations.1} parent=1 // pred_check_branch
      %14 = sbr.rel (0) target = $region9
    $region8: #{spm_activations.1} parent=1 // pred_region
      _
    $region9: #{spm_activations.1} parent=1 // pred_fallthru
      _
    %v15 = vld [vmem:[%s0] sm:$0x3]
    %v16 = vld [vmem:[%s1] sm:$0xff]
    %v17 = vld [vmem:[%s1 + $0x8] sm:$0xff]
    %v18 = vld [vmem:[%s1 + $0x10] sm:$0x3f]
    %v19 = vld [vmem:[%s1 + $0x18] sm:$0x3f]
    %v20 = vsub.f32 0.0, %v15
    %v21 = vmul.f32 %v20, 1.442695
    %v22 = vpow.pop %v21
    %v23 = vadd.f32 %v22, 1.0
    %v24 = vrcp.pop %v23
    %v25 = vlaneseq
    %vm26 = vcmp.ge.s32.totalorder %v25, 0
    %vm27 = vcmp.lt.s32.totalorder %v25, 256
    %vm28 = vmand %vm26, %vm27
    %29 = vst.msk [vmem:[#allocation2] sm:$0x3] %vm28, %v24
    %v30 = vtanh.pop %v16
    %v31 = vtanh.pop %v17
    %v32 = vtanh.pop %v18
    %v33 = vtanh.pop %v19
    %34 = vst [vmem:[#allocation4] sm:$0xff] %v30
    %35 = vst [vmem:[#allocation4 + $0x8] sm:$0xff] %v31
    %36 = vst [vmem:[#allocation4 + $0x10] sm:$0x3f] %v32
    %37 = vst [vmem:[#allocation4 + $0x18] sm:$0x3f] %v33
    // Predicated region
    $region10: #{spm_activations.1} parent=1 // pred_check
      _
    $region11: #{spm_activations.1} parent=1 // pred_check_branch
      %39 = sbr.rel (0) target = $region13
    $region12: #{spm_activations.1} parent=1 // pred_region
      %s41 = ssub.s32 32, 32
      %42 = vsyncadd [#allocation3], %s41
      %s44 = sshll.u32 [#allocation2], 4
      %s45 = int_to_ptr.vmem [resolvable:$true] %s44
      %47 = dma.vmem_to_hbm [thread:$0]  %s45, 32, %s2, [#allocation3]
    $region13: #{spm_activations.1} parent=1 // pred_fallthru
      _
    // Predicated region
    $region14: #{spm_activations.1} parent=1 // pred_check
      _
    $region15: #{spm_activations.1} parent=1 // pred_check_branch
      %49 = sbr.rel (0) target = $region17
    $region16: #{spm_activations.1} parent=1 // pred_region
      %s51 = ssub.s32 512, 512
      %52 = vsyncadd [#allocation5], %s51
      %s53 = sshll.u32 [#allocation4], 4
      %s54 = int_to_ptr.vmem [resolvable:$true] %s53
      %59 = dma.vmem_to_hbm [thread:$0]  %s54, 512, %s3, [#allocation5], 256, 256, 16
    $region17: #{spm_activations.1} parent=1 // pred_fallthru
      _
    // Predicated region
    $region18: #{spm_activations.1} parent=1 // pred_check
      _
    $region19: #{spm_activations.1} parent=1 // pred_check_branch
      %61 = sbr.rel (0) target = $region21
    $region20: #{spm_activations.1} parent=1 // pred_region
      %62 = dma.done [#allocation3], 32
    $region21: #{spm_activations.1} parent=1 // pred_fallthru
      _
    // Predicated region
    $region22: #{spm_activations.1} parent=1 // pred_check
      _
    $region23: #{spm_activations.1} parent=1 // pred_check_branch
      %64 = sbr.rel (0) target = $region25
    $region24: #{spm_activations.1} parent=1 // pred_region
      %65 = dma.done [#allocation5], 512
    $region25: #{spm_activations.1} parent=1 // pred_fallthru
      _
    %66 = vsyncpa [#allocation3], 1
    %67 = vsyncpa [#allocation5], 1

</llo_original>
